<compile_context>
chip_gen: v5e
topology: v5e:2x2
jax: 0.10.0
libtpu: 0.0.40
codegen_flags: <defaults>
</compile_context>

<pallas_src>
from functools import partial

import jax
import jax.numpy as jnp
from jax.experimental import pallas as pl
from jax.experimental.pallas import tpu as pltpu


def _con_att_kernel(x1_ref, x2_ref, w_ref, b_ref, o1_ref, o2_ref, *, use_mxu):
    # x1/x2 blocks: (C_eff, tile_p), channel-major (pixels in lanes).
    # w: (C_eff, C_eff) resident; b: (C_eff, 1) f32 resident.
    x1 = x1_ref[...]
    x2 = x2_ref[...]

    d = jnp.maximum(x1 - x2, 0)                               # relu(x1 - x2)

    if use_mxu:
        # MXU matmul, f32 accumulation (bf16 operands when inputs are bf16).
        logits = jnp.dot(w_ref[...], d.astype(w_ref.dtype),
                         preferred_element_type=jnp.float32) + b_ref[...]
    else:
        # Tiny effective C (< 16): a handful of VPU broadcast-FMAs.
        d32 = d.astype(jnp.float32)
        w = w_ref[...]
        logits = jnp.broadcast_to(b_ref[...], d32.shape)      # (C_eff, P)
        for ci in range(d32.shape[0]):
            logits = logits + w[:, ci:ci + 1] * d32[ci:ci + 1, :]

    # sigmoid(x) == 0.5 * tanh(0.5 * x) + 0.5 : exact identity, single EUP op.
    att = 0.5 * jnp.tanh(0.5 * logits) + 0.5
    att = att.astype(o1_ref.dtype)

    o1_ref[...] = x1 * att
    o2_ref[...] = x2 * att


def _vmem_capacity_bytes():
    """Physical VMEM of the current chip; conservative fallback if unknown."""
    try:
        info = pltpu.get_tpu_info()
        for name in ("vmem_capacity_bytes", "vmem_bytes", "vmem_size_bytes"):
            cap = getattr(info, name, None)
            if cap:
                return int(cap)
    except Exception:
        pass
    return 64 * 1024 * 1024  # v7x-sized: safe on every generation


def con_att_pallas(x1_nchw, x2_nchw, conv_weight, conv_bias, *, max_tile_p=None):
    """x1/x2: (N, C, H, W). conv_weight: (C, C, 1, 1). conv_bias: (C,)."""
    N, C, H, W = x1_nchw.shape
    P = H * W
    dtype = x1_nchw.dtype
    itemsize = jnp.dtype(dtype).itemsize

    # --- tiny-C batch folding (pure reshape; fills the sublane axis) --------
    sublane_target = 8 if itemsize >= 4 else 16
    nb = 1
    if C < sublane_target and N > 1:
        want = -(-sublane_target // C)                       # ceil
        divisors = [d for d in range(1, N + 1) if N % d == 0 and d * C <= 64]
        geq = [d for d in divisors if d >= want]
        nb = geq[0] if geq else divisors[-1]
    C_eff = nb * C
    N_grid = N // nb

    # NCHW -> (N_grid, nb*C, H*W): pure reshape, zero data movement.
    x1 = x1_nchw.reshape(N_grid, C_eff, P)
    x2 = x2_nchw.reshape(N_grid, C_eff, P)

    use_mxu = C_eff >= 16

    # PyTorch 1x1 conv: out[co] = sum_ci w[co, ci] * in[ci] + b[co].
    # When batch-folded, the weight becomes block-diagonal (one w per image).
    w_mat = conv_weight[:, :, 0, 0].astype(jnp.float32)       # (C, C)
    if nb > 1:
        w_mat = jnp.kron(jnp.eye(nb, dtype=jnp.float32), w_mat)   # (C_eff, C_eff)
    b_mat = jnp.tile(conv_bias.astype(jnp.float32), nb).reshape(C_eff, 1)
    if use_mxu and jnp.dtype(dtype) == jnp.bfloat16:
        w_mat = w_mat.astype(jnp.bfloat16)                    # bf16-native MXU
    w_itemsize = jnp.dtype(w_mat.dtype).itemsize

    # --- generation-aware VMEM budget & pixel-tile size ---------------------
    vmem_cap = _vmem_capacity_bytes()                         # 64 MiB v7x, 128 MiB v5e/v6e
    vmem_limit = int(min(3 * vmem_cap // 4, 64 * 1024 * 1024))
    budget = vmem_limit // 2                                  # working-set target

    # Per step: 4 I/O tiles double-buffered + f32 d/logits/att intermediates,
    # plus the double-buffered resident weight.
    w_bytes = 2 * C_eff * C_eff * w_itemsize
    per_pixel = C_eff * (8 * itemsize + 3 * 4)
    cap_pixels = max(128, (budget - w_bytes - (64 << 10)) // per_pixel)

    limit = cap_pixels if max_tile_p is None else min(cap_pixels, int(max_tile_p))
    if P <= limit:
        tile_p = P                                            # full-extent block
    else:
        tile_p = max(128, (limit // 128) * 128)               # 128-multiple, ragged tail
    n_ptiles = pl.cdiv(P, tile_p)

    # Expose >= 2 parallel steps when possible (v7x dual-TC + pipelining).
    if N_grid * n_ptiles < 2 and P > 128:
        tile_p = 128 * max(1, pl.cdiv(pl.cdiv(P, 2), 128))
        n_ptiles = pl.cdiv(P, tile_p)

    grid = (N_grid, n_ptiles)

    out1, out2 = pl.pallas_call(
        partial(_con_att_kernel, use_mxu=use_mxu),
        out_shape=(
            jax.ShapeDtypeStruct((N_grid, C_eff, P), dtype),
            jax.ShapeDtypeStruct((N_grid, C_eff, P), dtype),
        ),
        grid_spec=pltpu.PrefetchScalarGridSpec(
            num_scalar_prefetch=0,
            grid=grid,
            in_specs=[
                pl.BlockSpec((None, C_eff, tile_p), lambda n, p: (n, 0, p)),  # x1 tile
                pl.BlockSpec((None, C_eff, tile_p), lambda n, p: (n, 0, p)),  # x2 tile
                pl.BlockSpec((C_eff, C_eff), lambda n, p: (0, 0)),            # weight (resident)
                pl.BlockSpec((C_eff, 1), lambda n, p: (0, 0)),                # bias   (resident)
            ],
            out_specs=[
                pl.BlockSpec((None, C_eff, tile_p), lambda n, p: (n, 0, p)),
                pl.BlockSpec((None, C_eff, tile_p), lambda n, p: (n, 0, p)),
            ],
        ),
        compiler_params=pltpu.CompilerParams(
            dimension_semantics=("parallel", "parallel"),
            vmem_limit_bytes=vmem_limit,
        ),
    )(x1, x2, w_mat, b_mat)

    # (N_grid, C_eff, P) -> NCHW: pure reshape again.
    return out1.reshape(N, C, H, W), out2.reshape(N, C, H, W)


def con_att_reference(x1, x2, conv_weight, conv_bias):
    """Pure-JAX reference matching the PyTorch forward."""
    d = jnp.maximum(x1 - x2, 0.0)
    w = conv_weight[:, :, 0, 0]                               # (C_out, C_in)
    d = jnp.einsum("nchw,oc->nohw", d, w) + conv_bias[None, :, None, None]
    att = jax.nn.sigmoid(d)
    return x1 * att, x2 * att


if __name__ == "__main__":
    key = jax.random.PRNGKey(0)
    k1, k2, kw, kb = jax.random.split(key, 4)

    N, C, H, W = 2, 4, 16, 16
    x1 = jax.random.normal(k1, (N, C, H, W), dtype=jnp.float32)
    x2 = jax.random.normal(k2, (N, C, H, W), dtype=jnp.float32)

    # Deterministic synthetic params for nn.Conv2d(C, C, 1): weight (C, C, 1, 1), bias (C,)
    fan_in = C  # kernel_size=1
    bound = 1.0 / (fan_in ** 0.5)
    conv_weight = jax.random.uniform(kw, (C, C, 1, 1), jnp.float32, -bound, bound)
    conv_bias = jax.random.uniform(kb, (C,), jnp.float32, -bound, bound)

    out1, out2 = con_att_pallas(x1, x2, conv_weight, conv_bias)
    jax.block_until_ready((out1, out2))

    ref1, ref2 = con_att_reference(x1, x2, conv_weight, conv_bias)
    assert jnp.allclose(out1, ref1, atol=1e-5, rtol=1e-5)
    assert jnp.allclose(out2, ref2, atol=1e-5, rtol=1e-5)

    print("KERNEL_OK")
</pallas_src>

<mosaic_0001>
module attributes {stable_mosaic.version = 11 : i64} {
  func.func @_con_att_kernel(%arg0: i32, %arg1: i32, %arg2: memref<1x8x128xf32, #tpu.memory_space<vmem>>, %arg3: memref<1x8x128xf32, #tpu.memory_space<vmem>>, %arg4: memref<8x8xf32, #tpu.memory_space<vmem>>, %arg5: memref<8x1xf32, #tpu.memory_space<vmem>>, %arg6: memref<1x8x128xf32, #tpu.memory_space<vmem>>, %arg7: memref<1x8x128xf32, #tpu.memory_space<vmem>>) attributes {dimension_semantics = [#tpu.dimension_semantics<parallel>, #tpu.dimension_semantics<parallel>], iteration_bounds = array<i64: 1, 2>, scalar_prefetch = 0 : i64, scratch_operands = 0 : i64, tpu.core_type = #tpu.core_type<tc>, window_params = [{transform_indices = @transform_0, window_bounds = array<i64: 1, 8, 128>}, {transform_indices = @transform_1, window_bounds = array<i64: 1, 8, 128>}, {pipeline_mode = #tpu.pipeline_mode<synchronous>, transform_indices = @transform_2, window_bounds = array<i64: 8, 8>}, {pipeline_mode = #tpu.pipeline_mode<synchronous>, transform_indices = @transform_3, window_bounds = array<i64: 8, 1>}, {transform_indices = @transform_4, window_bounds = array<i64: 1, 8, 128>}, {transform_indices = @transform_5, window_bounds = array<i64: 1, 8, 128>}]} {
    %c0 = arith.constant 0 : index
    %c0_0 = arith.constant 0 : index
    %c0_1 = arith.constant 0 : index
    %0 = vector.load %arg2[%c0, %c0_0, %c0_1] : memref<1x8x128xf32, #tpu.memory_space<vmem>>, vector<1x8x128xf32>
    %1 = vector.shape_cast %0 : vector<1x8x128xf32> to vector<8x128xf32>
    %c0_2 = arith.constant 0 : index
    %c0_3 = arith.constant 0 : index
    %c0_4 = arith.constant 0 : index
    %2 = vector.load %arg3[%c0_2, %c0_3, %c0_4] : memref<1x8x128xf32, #tpu.memory_space<vmem>>, vector<1x8x128xf32>
    %3 = vector.shape_cast %2 : vector<1x8x128xf32> to vector<8x128xf32>
    %4 = arith.subf %1, %3 : vector<8x128xf32>
    %cst = arith.constant 0.000000e+00 : f32
    %5 = vector.broadcast %cst : f32 to vector<8x128xf32>
    %6 = arith.maximumf %4, %5 : vector<8x128xf32>
    %c0_5 = arith.constant 0 : index
    %c0_6 = arith.constant 0 : index
    %7 = vector.load %arg4[%c0_5, %c0_6] : memref<8x8xf32, #tpu.memory_space<vmem>>, vector<8x8xf32>
    %c0_7 = arith.constant 0 : index
    %c0_8 = arith.constant 0 : index
    %8 = vector.load %arg5[%c0_7, %c0_8] : memref<8x1xf32, #tpu.memory_space<vmem>>, vector<8x1xf32>
    %9 = vector.shape_cast %8 : vector<8x1xf32> to vector<8x1xf32>
    %10 = vector.broadcast %9 : vector<8x1xf32> to vector<8x128xf32>
    %11 = vector.extract_strided_slice %7 {offsets = [0, 0], sizes = [8, 1], strides = [1, 1]} : vector<8x8xf32> to vector<8x1xf32>
    %12 = vector.extract_strided_slice %6 {offsets = [0, 0], sizes = [1, 128], strides = [1, 1]} : vector<8x128xf32> to vector<1x128xf32>
    %13 = vector.broadcast %11 : vector<8x1xf32> to vector<8x128xf32>
    %14 = vector.broadcast %12 : vector<1x128xf32> to vector<8x128xf32>
    %15 = arith.mulf %13, %14 : vector<8x128xf32>
    %16 = arith.addf %10, %15 : vector<8x128xf32>
    %17 = vector.extract_strided_slice %7 {offsets = [0, 1], sizes = [8, 1], strides = [1, 1]} : vector<8x8xf32> to vector<8x1xf32>
    %18 = vector.extract_strided_slice %6 {offsets = [1, 0], sizes = [1, 128], strides = [1, 1]} : vector<8x128xf32> to vector<1x128xf32>
    %19 = vector.broadcast %17 : vector<8x1xf32> to vector<8x128xf32>
    %20 = vector.broadcast %18 : vector<1x128xf32> to vector<8x128xf32>
    %21 = arith.mulf %19, %20 : vector<8x128xf32>
    %22 = arith.addf %16, %21 : vector<8x128xf32>
    %23 = vector.extract_strided_slice %7 {offsets = [0, 2], sizes = [8, 1], strides = [1, 1]} : vector<8x8xf32> to vector<8x1xf32>
    %24 = vector.extract_strided_slice %6 {offsets = [2, 0], sizes = [1, 128], strides = [1, 1]} : vector<8x128xf32> to vector<1x128xf32>
    %25 = vector.broadcast %23 : vector<8x1xf32> to vector<8x128xf32>
    %26 = vector.broadcast %24 : vector<1x128xf32> to vector<8x128xf32>
    %27 = arith.mulf %25, %26 : vector<8x128xf32>
    %28 = arith.addf %22, %27 : vector<8x128xf32>
    %29 = vector.extract_strided_slice %7 {offsets = [0, 3], sizes = [8, 1], strides = [1, 1]} : vector<8x8xf32> to vector<8x1xf32>
    %30 = vector.extract_strided_slice %6 {offsets = [3, 0], sizes = [1, 128], strides = [1, 1]} : vector<8x128xf32> to vector<1x128xf32>
    %31 = vector.broadcast %29 : vector<8x1xf32> to vector<8x128xf32>
    %32 = vector.broadcast %30 : vector<1x128xf32> to vector<8x128xf32>
    %33 = arith.mulf %31, %32 : vector<8x128xf32>
    %34 = arith.addf %28, %33 : vector<8x128xf32>
    %35 = vector.extract_strided_slice %7 {offsets = [0, 4], sizes = [8, 1], strides = [1, 1]} : vector<8x8xf32> to vector<8x1xf32>
    %36 = vector.extract_strided_slice %6 {offsets = [4, 0], sizes = [1, 128], strides = [1, 1]} : vector<8x128xf32> to vector<1x128xf32>
    %37 = vector.broadcast %35 : vector<8x1xf32> to vector<8x128xf32>
    %38 = vector.broadcast %36 : vector<1x128xf32> to vector<8x128xf32>
    %39 = arith.mulf %37, %38 : vector<8x128xf32>
    %40 = arith.addf %34, %39 : vector<8x128xf32>
    %41 = vector.extract_strided_slice %7 {offsets = [0, 5], sizes = [8, 1], strides = [1, 1]} : vector<8x8xf32> to vector<8x1xf32>
    %42 = vector.extract_strided_slice %6 {offsets = [5, 0], sizes = [1, 128], strides = [1, 1]} : vector<8x128xf32> to vector<1x128xf32>
    %43 = vector.broadcast %41 : vector<8x1xf32> to vector<8x128xf32>
    %44 = vector.broadcast %42 : vector<1x128xf32> to vector<8x128xf32>
    %45 = arith.mulf %43, %44 : vector<8x128xf32>
    %46 = arith.addf %40, %45 : vector<8x128xf32>
    %47 = vector.extract_strided_slice %7 {offsets = [0, 6], sizes = [8, 1], strides = [1, 1]} : vector<8x8xf32> to vector<8x1xf32>
    %48 = vector.extract_strided_slice %6 {offsets = [6, 0], sizes = [1, 128], strides = [1, 1]} : vector<8x128xf32> to vector<1x128xf32>
    %49 = vector.broadcast %47 : vector<8x1xf32> to vector<8x128xf32>
    %50 = vector.broadcast %48 : vector<1x128xf32> to vector<8x128xf32>
    %51 = arith.mulf %49, %50 : vector<8x128xf32>
    %52 = arith.addf %46, %51 : vector<8x128xf32>
    %53 = vector.extract_strided_slice %7 {offsets = [0, 7], sizes = [8, 1], strides = [1, 1]} : vector<8x8xf32> to vector<8x1xf32>
    %54 = vector.extract_strided_slice %6 {offsets = [7, 0], sizes = [1, 128], strides = [1, 1]} : vector<8x128xf32> to vector<1x128xf32>
    %55 = vector.broadcast %53 : vector<8x1xf32> to vector<8x128xf32>
    %56 = vector.broadcast %54 : vector<1x128xf32> to vector<8x128xf32>
    %57 = arith.mulf %55, %56 : vector<8x128xf32>
    %58 = arith.addf %52, %57 : vector<8x128xf32>
    %cst_9 = arith.constant 5.000000e-01 : f32
    %59 = vector.broadcast %cst_9 : f32 to vector<8x128xf32>
    %60 = arith.mulf %59, %58 : vector<8x128xf32>
    %61 = math.tanh %60 : vector<8x128xf32>
    %cst_10 = arith.constant 5.000000e-01 : f32
    %62 = vector.broadcast %cst_10 : f32 to vector<8x128xf32>
    %63 = arith.mulf %62, %61 : vector<8x128xf32>
    %cst_11 = arith.constant 5.000000e-01 : f32
    %64 = vector.broadcast %cst_11 : f32 to vector<8x128xf32>
    %65 = arith.addf %63, %64 : vector<8x128xf32>
    %66 = arith.mulf %1, %65 : vector<8x128xf32>
    %c0_12 = arith.constant 0 : index
    %c0_13 = arith.constant 0 : index
    %c0_14 = arith.constant 0 : index
    %67 = vector.load %arg6[%c0_12, %c0_13, %c0_14] : memref<1x8x128xf32, #tpu.memory_space<vmem>>, vector<1x8x128xf32>
    %68 = vector.shape_cast %67 : vector<1x8x128xf32> to vector<8x128xf32>
    %69 = vector.shape_cast %66 : vector<8x128xf32> to vector<1x8x128xf32>
    tpu.vector_store %arg6[%c0_12, %c0_13, %c0_14], %69 {strides = array<i32>} : memref<1x8x128xf32, #tpu.memory_space<vmem>>, vector<1x8x128xf32>,
    %70 = arith.mulf %3, %65 : vector<8x128xf32>
    %c0_15 = arith.constant 0 : index
    %c0_16 = arith.constant 0 : index
    %c0_17 = arith.constant 0 : index
    %71 = vector.load %arg7[%c0_15, %c0_16, %c0_17] : memref<1x8x128xf32, #tpu.memory_space<vmem>>, vector<1x8x128xf32>
    %72 = vector.shape_cast %71 : vector<1x8x128xf32> to vector<8x128xf32>
    %73 = vector.shape_cast %70 : vector<8x128xf32> to vector<1x8x128xf32>
    tpu.vector_store %arg7[%c0_15, %c0_16, %c0_17], %73 {strides = array<i32>} : memref<1x8x128xf32, #tpu.memory_space<vmem>>, vector<1x8x128xf32>,
    return
  }
  func.func @transform_0(%arg0: i32, %arg1: i32) -> (i32, i32, i32) {
    %c0_i32 = arith.constant 0 : i32
    %c0_i32_0 = arith.constant 0 : i32
    return %arg0, %c0_i32, %arg1 : i32, i32, i32
  }
  func.func @transform_1(%arg0: i32, %arg1: i32) -> (i32, i32, i32) {
    %c0_i32 = arith.constant 0 : i32
    %c0_i32_0 = arith.constant 0 : i32
    return %arg0, %c0_i32, %arg1 : i32, i32, i32
  }
  func.func @transform_2(%arg0: i32, %arg1: i32) -> (i32, i32) {
    %c0_i32 = arith.constant 0 : i32
    %c0_i32_0 = arith.constant 0 : i32
    %c0_i32_1 = arith.constant 0 : i32
    return %c0_i32, %c0_i32_0 : i32, i32
  }
  func.func @transform_3(%arg0: i32, %arg1: i32) -> (i32, i32) {
    %c0_i32 = arith.constant 0 : i32
    %c0_i32_0 = arith.constant 0 : i32
    %c0_i32_1 = arith.constant 0 : i32
    return %c0_i32, %c0_i32_0 : i32, i32
  }
  func.func @transform_4(%arg0: i32, %arg1: i32) -> (i32, i32, i32) {
    %c0_i32 = arith.constant 0 : i32
    %c0_i32_0 = arith.constant 0 : i32
    return %arg0, %c0_i32, %arg1 : i32, i32, i32
  }
  func.func @transform_5(%arg0: i32, %arg1: i32) -> (i32, i32, i32) {
    %c0_i32 = arith.constant 0 : i32
    %c0_i32_0 = arith.constant 0 : i32
    return %arg0, %c0_i32, %arg1 : i32, i32, i32
  }
}

</mosaic_0001>

<llo_original>
// kernel: tpu_custom_call.1
$region0: #{tpu_custom_call.1}
  #allocation0 [shape = 'u32[]', space=smem, size = 0x4, offset = 0x4, fixed_abs, tag = 'smem constant byte address 0x4 - core index']
  #allocation1 [shape = 'u32[72,128]{1,0:T(1,128)}', space=vmem, size = 0x9000, scoped, tag = 'internal scratch']
  %s0 = inlined_call_operand.hbm [shape: f32[1,8,256], index: 0, kind: input, shape index: {}]
  %s1 = inlined_call_operand.hbm [shape: f32[1,8,256], index: 1, kind: input, shape index: {}]
  %s2 = inlined_call_operand.vmem [shape: f32[8,8], index: 2, kind: input, shape index: {}]
  %s3 = inlined_call_operand.vmem [shape: f32[8,1], index: 3, kind: input, shape index: {}]
  %s4 = inlined_call_operand.hbm [shape: f32[1,8,256], index: 4, kind: output, shape index: {0}]
  %s5 = inlined_call_operand.hbm [shape: f32[1,8,256], index: 5, kind: output, shape index: {1}]
  %6 = xla_tuple %s4, %s5
  %s7 = sld [smem:[#allocation0]]
  $region65: #{tpu_custom_call.1} parent=0
    _
  %s9 = ssub.s32 1, %s7
  %s10 = scalar_select 0, %s9, %s7
  $region1: #{tpu_custom_call.1} parent=0
    #allocation2 [shape = 'u8[8192]{0}', space=vmem, size = 0x2000, scoped, tag = 'input window, operand 0']
    #allocation3 [shape = 's32[2]{0}', space=sflag, size = 0x8, scoped, tag = 'scoped memory for tpu_custom_call.1']
    #allocation4 [shape = 's32[2]{0}', space=sflag, size = 0x8, scoped, tag = 'scoped memory for tpu_custom_call.1']
    #allocation5 [shape = 'u8[8192]{0}', space=vmem, size = 0x2000, scoped, tag = 'input window, operand 1']
    #allocation6 [shape = 's32[2]{0}', space=sflag, size = 0x8, scoped, tag = 'scoped memory for tpu_custom_call.1']
    #allocation7 [shape = 'u8[8192]{0}', space=vmem, size = 0x2000, scoped, tag = 'output window, operand 0']
    #allocation8 [shape = 'u8[8192]{0}', space=vmem, size = 0x2000, scoped, tag = 'output window, operand 1']
    #allocation9 [shape = 's32[2]{0}', space=sflag, size = 0x8, scoped, tag = 'scoped memory for tpu_custom_call.1']
    %11 = vsyncpa [#allocation3], 0
    %s12 = scalar_lea.sflag [#allocation3], 1
    %13 = vsyncpa %s12, 0
    %14 = vsyncpa [#allocation6], 0
    %s15 = scalar_lea.sflag [#allocation6], 1
    %16 = vsyncpa %s15, 0
    %17 = vsyncpa [#allocation4], 0
    %s18 = scalar_lea.sflag [#allocation4], 1
    %19 = vsyncpa %s18, 0
    %20 = vsyncpa [#allocation9], 0
    %s21 = scalar_lea.sflag [#allocation9], 1
    %22 = vsyncpa %s21, 0
    loop: start=0, step=1, limit=4
    $region2: #{tpu_custom_call.1} parent=1 // loop_pre_header
      _
    $region3: #{tpu_custom_call.1} parent=1 // loop_header
      %s24 = sphi 0, %s28
      %p25 = scmp.ge.s32.totalorder %s24, 4
      %s31 = sphi 0, %s43
      %s32 = sphi 0, %s39
      %s33 = sphi 0, %s31
      %s34 = sphi 0, %s32
      %s35 = sphi 0, %s33
      %s36 = sphi 0, %s34
      %s48 = sphi 0, %s50
      %s51 = sphi 0, %s48
      %s52 = sphi 0, %s51
      %s68 = sphi 0, %s52
      %s76 = sphi 0, %s78
      %s79 = sphi 0, %s76
      %s80 = sphi 0, %s79
      %s96 = sphi 0, %s80
      %s100 = sphi 0, %s100
      %s102 = sphi 0, %s100
      %s103 = sphi 0, %s102
      %s117 = sphi 0, %s103
      %s121 = sphi 0, %s121
      %s123 = sphi 0, %s121
      %s124 = sphi 0, %s123
      %s138 = sphi 0, %s124
      %s146 = sphi 0, %s148
      %s149 = sphi 0, %s146
      %s150 = sphi 0, %s149
      %s166 = sphi 0, %s150
      %s174 = sphi 0, %s176
      %s177 = sphi 0, %s174
      %s178 = sphi 0, %s177
      %s194 = sphi 0, %s178
    $region4: #{tpu_custom_call.1} parent=1 // loop_header_branch
      %27 = sbr.rel (%p25) target = $region8
    $region5: #{tpu_custom_call.1} parent=1 // loop_body
      %s29 = ssub.s32 %s24, 1
      %s30 = ssub.s32 %s24, 2
      %s37 = sadd.s32 1, %s32
      %p38 = scmp.ge.s32.totalorder %s37, 2
      %s39 = scalar_select %p38, 0, %s37
      %s40 = sadd.s32 1, %s31
      %s41 = scalar_select %p38, %s40, %s31
      %p42 = scmp.ge.s32.totalorder %s41, 1
      %s43 = scalar_select %p42, 0, %s41
      %s44 = ssub.s32 %s31, %s43
      %s45 = ssub.s32 %s32, %s39
      %s46 = sor.u32 %s44, %s45
      %p47 = scmp.eq.s32.totalorder %s46, 0
      %s49 = sadd.s32 %s48, 1
      %s50 = scalar_select %p47, %s48, %s49
      %p53 = pneg %p47
      %p54 = scmp.eq.s32.totalorder %s24, 1
      %p55 = por %p53, %p54
      %p56 = scmp.ne.s32.totalorder %s48, %s51
      %p57 = scmp.eq.s32.totalorder %s24, 0
      %p58 = por %p56, %p57
      %p59 = scmp.ne.s32.totalorder %s48, %s51
      %p60 = scmp.eq.s32.totalorder %s29, 1
      %p61 = por %p59, %p60
      %p62 = scmp.ne.s32.totalorder %s51, %s52
      %p63 = scmp.eq.s32.totalorder %s29, 0
      %p64 = por %p62, %p63
      %p65 = scmp.ne.s32.totalorder %s51, %s52
      %p66 = scmp.eq.s32.totalorder %s30, 1
      %p67 = por %p65, %p66
      %p69 = scmp.ne.s32.totalorder %s52, %s68
      %p70 = scmp.eq.s32.totalorder %s30, 0
      %p71 = por %p69, %p70
      %s72 = ssub.s32 %s31, %s43
      %s73 = ssub.s32 %s32, %s39
      %s74 = sor.u32 %s72, %s73
      %p75 = scmp.eq.s32.totalorder %s74, 0
      %s77 = sadd.s32 %s76, 1
      %s78 = scalar_select %p75, %s76, %s77
      %p81 = pneg %p75
      %p82 = scmp.eq.s32.totalorder %s24, 1
      %p83 = por %p81, %p82
      %p84 = scmp.ne.s32.totalorder %s76, %s79
      %p85 = scmp.eq.s32.totalorder %s24, 0
      %p86 = por %p84, %p85
      %p87 = scmp.ne.s32.totalorder %s76, %s79
      %p88 = scmp.eq.s32.totalorder %s29, 1
      %p89 = por %p87, %p88
      %p90 = scmp.ne.s32.totalorder %s79, %s80
      %p91 = scmp.eq.s32.totalorder %s29, 0
      %p92 = por %p90, %p91
      %p93 = scmp.ne.s32.totalorder %s79, %s80
      %p94 = scmp.eq.s32.totalorder %s30, 1
      %p95 = por %p93, %p94
      %p97 = scmp.ne.s32.totalorder %s80, %s96
      %p98 = scmp.eq.s32.totalorder %s30, 0
      %p99 = por %p97, %p98
      %s101 = sadd.s32 %s100, 1
      %p104 = scmp.eq.s32.totalorder %s24, 1
      %p105 = scmp.ne.s32.totalorder %s100, %s102
      %p106 = scmp.eq.s32.totalorder %s24, 0
      %p107 = por %p105, %p106
      %p108 = scmp.ne.s32.totalorder %s100, %s102
      %p109 = scmp.eq.s32.totalorder %s29, 1
      %p110 = por %p108, %p109
      %p111 = scmp.ne.s32.totalorder %s102, %s103
      %p112 = scmp.eq.s32.totalorder %s29, 0
      %p113 = por %p111, %p112
      %p114 = scmp.ne.s32.totalorder %s102, %s103
      %p115 = scmp.eq.s32.totalorder %s30, 1
      %p116 = por %p114, %p115
      %p118 = scmp.ne.s32.totalorder %s103, %s117
      %p119 = scmp.eq.s32.totalorder %s30, 0
      %p120 = por %p118, %p119
      %s122 = sadd.s32 %s121, 1
      %p125 = scmp.eq.s32.totalorder %s24, 1
      %p126 = scmp.ne.s32.totalorder %s121, %s123
      %p127 = scmp.eq.s32.totalorder %s24, 0
      %p128 = por %p126, %p127
      %p129 = scmp.ne.s32.totalorder %s121, %s123
      %p130 = scmp.eq.s32.totalorder %s29, 1
      %p131 = por %p129, %p130
      %p132 = scmp.ne.s32.totalorder %s123, %s124
      %p133 = scmp.eq.s32.totalorder %s29, 0
      %p134 = por %p132, %p133
      %p135 = scmp.ne.s32.totalorder %s123, %s124
      %p136 = scmp.eq.s32.totalorder %s30, 1
      %p137 = por %p135, %p136
      %p139 = scmp.ne.s32.totalorder %s124, %s138
      %p140 = scmp.eq.s32.totalorder %s30, 0
      %p141 = por %p139, %p140
      %s142 = ssub.s32 %s31, %s43
      %s143 = ssub.s32 %s32, %s39
      %s144 = sor.u32 %s142, %s143
      %p145 = scmp.eq.s32.totalorder %s144, 0
      %s147 = sadd.s32 %s146, 1
      %s148 = scalar_select %p145, %s146, %s147
      %p151 = pneg %p145
      %p152 = scmp.eq.s32.totalorder %s24, 1
      %p153 = por %p151, %p152
      %p154 = scmp.ne.s32.totalorder %s146, %s149
      %p155 = scmp.eq.s32.totalorder %s24, 0
      %p156 = por %p154, %p155
      %p157 = scmp.ne.s32.totalorder %s146, %s149
      %p158 = scmp.eq.s32.totalorder %s29, 1
      %p159 = por %p157, %p158
      %p160 = scmp.ne.s32.totalorder %s149, %s150
      %p161 = scmp.eq.s32.totalorder %s29, 0
      %p162 = por %p160, %p161
      %p163 = scmp.ne.s32.totalorder %s149, %s150
      %p164 = scmp.eq.s32.totalorder %s30, 1
      %p165 = por %p163, %p164
      %p167 = scmp.ne.s32.totalorder %s150, %s166
      %p168 = scmp.eq.s32.totalorder %s30, 0
      %p169 = por %p167, %p168
      %s170 = ssub.s32 %s31, %s43
      %s171 = ssub.s32 %s32, %s39
      %s172 = sor.u32 %s170, %s171
      %p173 = scmp.eq.s32.totalorder %s172, 0
      %s175 = sadd.s32 %s174, 1
      %s176 = scalar_select %p173, %s174, %s175
      %p179 = pneg %p173
      %p180 = scmp.eq.s32.totalorder %s24, 1
      %p181 = por %p179, %p180
      %p182 = scmp.ne.s32.totalorder %s174, %s177
      %p183 = scmp.eq.s32.totalorder %s24, 0
      %p184 = por %p182, %p183
      %p185 = scmp.ne.s32.totalorder %s174, %s177
      %p186 = scmp.eq.s32.totalorder %s29, 1
      %p187 = por %p185, %p186
      %p188 = scmp.ne.s32.totalorder %s177, %s178
      %p189 = scmp.eq.s32.totalorder %s29, 0
      %p190 = por %p188, %p189
      %p191 = scmp.ne.s32.totalorder %s177, %s178
      %p192 = scmp.eq.s32.totalorder %s30, 1
      %p193 = por %p191, %p192
      %p195 = scmp.ne.s32.totalorder %s178, %s194
      %p196 = scmp.eq.s32.totalorder %s30, 0
      %p197 = por %p195, %p196
      %p198 = scmp.le.s32.totalorder 1, %s24
      %p199 = scmp.lt.s32.totalorder %s24, 3
      %p200 = pnand %p198, %p199
      %p201 = pneg %p200
      // Predicated region
      $region9: #{tpu_custom_call.1} parent=5 // pred_check
        _
      $region10: #{tpu_custom_call.1} parent=5 // pred_check_branch
        %203 = sbr.rel (%p200) target = $region12
      $region11: #{tpu_custom_call.1} parent=5 // pred_region
        %s204 = ssub.s32 %s24, 1
        // Predicated region
        $region13: #{tpu_custom_call.1} parent=11 // pred_check
          %p205 = pneg %p113
        $region14: #{tpu_custom_call.1} parent=11 // pred_check_branch
          %207 = sbr.rel (%p205) target = $region16
        $region15: #{tpu_custom_call.1} parent=11 // pred_region
          _
        $region16: #{tpu_custom_call.1} parent=11 // pred_fallthru
          _
        // Predicated region
        $region17: #{tpu_custom_call.1} parent=11 // pred_check
          %p208 = pneg %p134
        $region18: #{tpu_custom_call.1} parent=11 // pred_check_branch
          %210 = sbr.rel (%p208) target = $region20
        $region19: #{tpu_custom_call.1} parent=11 // pred_region
          _
        $region20: #{tpu_custom_call.1} parent=11 // pred_fallthru
          _
      $region12: #{tpu_custom_call.1} parent=5 // pred_fallthru
        _
      %p211 = scmp.lt.s32.totalorder %s24, 2
      // Predicated region
      $region21: #{tpu_custom_call.1} parent=5 // pred_check
        %p212 = pneg %p211
      $region22: #{tpu_custom_call.1} parent=5 // pred_check_branch
        %214 = sbr.rel (%p212) target = $region24
      $region23: #{tpu_custom_call.1} parent=5 // pred_region
        // Predicated region
        $region25: #{tpu_custom_call.1} parent=23 // pred_check
          %p215 = pneg %p58
        $region26: #{tpu_custom_call.1} parent=23 // pred_check_branch
          %217 = sbr.rel (%p215) target = $region28
        $region27: #{tpu_custom_call.1} parent=23 // pred_region
          %s218 = sand.u32 %s48, 1
          %s219 = scalar_lea.sflag [#allocation3], %s218
          %s220 = sand.u32 %s48, 1
          %s221 = smul.addr %s220, 8
          %s222 = scalar_lea.vmem [#allocation2], %s221
          %224 = vsyncadd %s219, 0
          %s225 = smul.addr %s31, 2
          %s226 = sadd.s32 %s32, %s225
          %s227 = smul.addr %s226, 8
          %s228 = scalar_lea.hbm %s0, %s227
          %s230 = sshll.u32 %s228, 4
          %s231 = int_to_ptr.hbm [resolvable:$true] %s230
          %s232 = sshll.u32 %s222, 4
          %s233 = int_to_ptr.vmem [resolvable:$true] %s232
          %235 = dma.hbm_to_vmem [thread:$0]  %s231, 128, %s233, %s219
        $region28: #{tpu_custom_call.1} parent=23 // pred_fallthru
          _
        // Predicated region
        $region29: #{tpu_custom_call.1} parent=23 // pred_check
          %p236 = pneg %p86
        $region30: #{tpu_custom_call.1} parent=23 // pred_check_branch
          %238 = sbr.rel (%p236) target = $region32
        $region31: #{tpu_custom_call.1} parent=23 // pred_region
          %s239 = sand.u32 %s76, 1
          %s240 = scalar_lea.sflag [#allocation6], %s239
          %s241 = sand.u32 %s76, 1
          %s242 = smul.addr %s241, 8
          %s243 = scalar_lea.vmem [#allocation5], %s242
          %245 = vsyncadd %s240, 0
          %s246 = smul.addr %s31, 2
          %s247 = sadd.s32 %s32, %s246
          %s248 = smul.addr %s247, 8
          %s249 = scalar_lea.hbm %s1, %s248
          %s251 = sshll.u32 %s249, 4
          %s252 = int_to_ptr.hbm [resolvable:$true] %s251
          %s253 = sshll.u32 %s243, 4
          %s254 = int_to_ptr.vmem [resolvable:$true] %s253
          %256 = dma.hbm_to_vmem [thread:$0]  %s252, 128, %s254, %s240
        $region32: #{tpu_custom_call.1} parent=23 // pred_fallthru
          _
      $region24: #{tpu_custom_call.1} parent=5 // pred_fallthru
        _
      %p257 = scmp.le.s32.totalorder 1, %s24
      %p258 = scmp.lt.s32.totalorder %s24, 3
      %p259 = pnand %p257, %p258
      %p260 = pneg %p259
      // Predicated region
      $region33: #{tpu_custom_call.1} parent=5 // pred_check
        _
      $region34: #{tpu_custom_call.1} parent=5 // pred_check_branch
        %262 = sbr.rel (%p259) target = $region36
      $region35: #{tpu_custom_call.1} parent=5 // pred_region
        %s263 = ssub.s32 %s24, 1
        %s264 = sand.u32 %s51, 1
        %s265 = scalar_lea.sflag [#allocation3], %s264
        %s266 = sand.u32 %s51, 1
        %s267 = smul.addr %s266, 8
        %s268 = scalar_lea.vmem [#allocation2], %s267
        // Predicated region
        $region37: #{tpu_custom_call.1} parent=35 // pred_check
          %p269 = pneg %p64
        $region38: #{tpu_custom_call.1} parent=35 // pred_check_branch
          %271 = sbr.rel (%p269) target = $region40
        $region39: #{tpu_custom_call.1} parent=35 // pred_region
          %273 = dma.done %s265, 128
        $region40: #{tpu_custom_call.1} parent=35 // pred_fallthru
          _
        %s274 = sand.u32 %s79, 1
        %s275 = scalar_lea.sflag [#allocation6], %s274
        %s276 = sand.u32 %s79, 1
        %s277 = smul.addr %s276, 8
        %s278 = scalar_lea.vmem [#allocation5], %s277
        // Predicated region
        $region41: #{tpu_custom_call.1} parent=35 // pred_check
          %p279 = pneg %p92
        $region42: #{tpu_custom_call.1} parent=35 // pred_check_branch
          %281 = sbr.rel (%p279) target = $region44
        $region43: #{tpu_custom_call.1} parent=35 // pred_region
          %283 = dma.done %s275, 128
        $region44: #{tpu_custom_call.1} parent=35 // pred_fallthru
          _
        %s284 = sand.u32 %s51, 1
        %s285 = scalar_lea.sflag [#allocation3], %s284
        %s286 = sand.u32 %s51, 1
        %s287 = smul.addr %s286, 8
        %s288 = scalar_lea.vmem [#allocation2], %s287
        %p289 = pneg %p64
        %p290 = pneg %p61
        %s291 = sand.u32 %s79, 1
        %s292 = scalar_lea.sflag [#allocation6], %s291
        %s293 = sand.u32 %s79, 1
        %s294 = smul.addr %s293, 8
        %s295 = scalar_lea.vmem [#allocation5], %s294
        %p296 = pneg %p92
        %p297 = pneg %p89
        %p298 = pneg %p113
        %p299 = pneg %p110
        %p300 = pneg %p134
        %p301 = pneg %p131
        %p302 = pneg %p162
        %p303 = pneg %p159
        %s304 = sand.u32 %s149, 1
        %s305 = scalar_lea.sflag [#allocation4], %s304
        %s306 = sand.u32 %s149, 1
        %s307 = smul.addr %s306, 8
        %s308 = scalar_lea.vmem [#allocation7], %s307
        %p309 = pneg %p190
        %p310 = pneg %p187
        %s311 = sand.u32 %s177, 1
        %s312 = scalar_lea.sflag [#allocation9], %s311
        %s313 = sand.u32 %s177, 1
        %s314 = smul.addr %s313, 8
        %s315 = scalar_lea.vmem [#allocation8], %s314
        %v316 = vld [vmem:[%s268] sm:$0xff]
        %v317 = vld [vmem:[%s278] sm:$0xff]
        %v318 = vsub.f32 %v316, %v317
        %v319 = vmax.f32 %v318, 0.0
        %v320 = vld [vmem:[%s2] sm:$0xff]
        %v321 = vld [vmem:[%s3] sm:$0xff]
        %323 = vset.pattern.permute.xlu0 0
        %324 = vperm.xlu0 %323, %v321
        %v325 = vpop.permute.xlu0 %324
        %328 = vset.pattern.permute.xlu0 0
        %329 = vperm.xlu0 %328, %v320
        %v330 = vpop.permute.xlu0 %329
        %v332 = vperm.slane %v319, 0
        %v333 = vmul.f32 %v330, %v332
        %v334 = vadd.f32 %v325, %v333
        %335 = vset.pattern.permute.xlu0 1
        %336 = vperm.xlu0 %335, %v320
        %v337 = vpop.permute.xlu0 %336
        %v339 = vperm.slane %v319, 1
        %v340 = vmul.f32 %v337, %v339
        %v341 = vadd.f32 %v334, %v340
        %342 = vset.pattern.permute.xlu0 2
        %343 = vperm.xlu0 %342, %v320
        %v344 = vpop.permute.xlu0 %343
        %v346 = vperm.slane %v319, 2
        %v347 = vmul.f32 %v344, %v346
        %v348 = vadd.f32 %v341, %v347
        %349 = vset.pattern.permute.xlu0 3
        %350 = vperm.xlu0 %349, %v320
        %v351 = vpop.permute.xlu0 %350
        %v353 = vperm.slane %v319, 3
        %v354 = vmul.f32 %v351, %v353
        %v355 = vadd.f32 %v348, %v354
        %356 = vset.pattern.permute.xlu0 4
        %357 = vperm.xlu0 %356, %v320
        %v358 = vpop.permute.xlu0 %357
        %v360 = vperm.slane %v319, 4
        %v361 = vmul.f32 %v358, %v360
        %v362 = vadd.f32 %v355, %v361
        %363 = vset.pattern.permute.xlu0 5
        %364 = vperm.xlu0 %363, %v320
        %v365 = vpop.permute.xlu0 %364
        %v367 = vperm.slane %v319, 5
        %v368 = vmul.f32 %v365, %v367
        %v369 = vadd.f32 %v362, %v368
        %370 = vset.pattern.permute.xlu0 6
        %371 = vperm.xlu0 %370, %v320
        %v372 = vpop.permute.xlu0 %371
        %v374 = vperm.slane %v319, 6
        %v375 = vmul.f32 %v372, %v374
        %v376 = vadd.f32 %v369, %v375
        %377 = vset.pattern.permute.xlu0 7
        %378 = vperm.xlu0 %377, %v320
        %v379 = vpop.permute.xlu0 %378
        %v381 = vperm.slane %v319, 7
        %v382 = vmul.f32 %v379, %v381
        %v383 = vadd.f32 %v376, %v382
        %v384 = vmul.f32 %v383, 0.5
        %v385 = vtanh.pop %v384
        %v386 = vmul.f32 %v385, 0.5
        %v387 = vadd.f32 %v386, 0.5
        %v388 = vmul.f32 %v316, %v387
        %389 = vst [vmem:[%s308] sm:$0xff] %v388
        %v390 = vmul.f32 %v317, %v387
        %391 = vst [vmem:[%s315] sm:$0xff] %v390
        %s392 = sand.u32 %s149, 1
        %s393 = scalar_lea.sflag [#allocation4], %s392
        %s394 = sand.u32 %s149, 1
        %s395 = smul.addr %s394, 8
        %s396 = scalar_lea.vmem [#allocation7], %s395
        %s397 = sand.u32 %s177, 1
        %s398 = scalar_lea.sflag [#allocation9], %s397
        %s399 = sand.u32 %s177, 1
        %s400 = smul.addr %s399, 8
        %s401 = scalar_lea.vmem [#allocation8], %s400
        // Predicated region
        $region45: #{tpu_custom_call.1} parent=35 // pred_check
          %p402 = pneg %p159
        $region46: #{tpu_custom_call.1} parent=35 // pred_check_branch
          %404 = sbr.rel (%p402) target = $region48
        $region47: #{tpu_custom_call.1} parent=35 // pred_region
          %406 = vsyncadd %s393, 0
          %s407 = smul.addr %s33, 2
          %s408 = sadd.s32 %s34, %s407
          %s409 = smul.addr %s408, 8
          %s410 = scalar_lea.hbm %s4, %s409
          %s412 = sshll.u32 %s396, 4
          %s413 = int_to_ptr.vmem [resolvable:$true] %s412
          %s414 = sshll.u32 %s410, 4
          %s415 = int_to_ptr.hbm [resolvable:$true] %s414
          %417 = dma.vmem_to_hbm [thread:$0]  %s413, 128, %s415, %s393
        $region48: #{tpu_custom_call.1} parent=35 // pred_fallthru
          _
        // Predicated region
        $region49: #{tpu_custom_call.1} parent=35 // pred_check
          %p418 = pneg %p187
        $region50: #{tpu_custom_call.1} parent=35 // pred_check_branch
          %420 = sbr.rel (%p418) target = $region52
        $region51: #{tpu_custom_call.1} parent=35 // pred_region
          %422 = vsyncadd %s398, 0
          %s423 = smul.addr %s33, 2
          %s424 = sadd.s32 %s34, %s423
          %s425 = smul.addr %s424, 8
          %s426 = scalar_lea.hbm %s5, %s425
          %s428 = sshll.u32 %s401, 4
          %s429 = int_to_ptr.vmem [resolvable:$true] %s428
          %s430 = sshll.u32 %s426, 4
          %s431 = int_to_ptr.hbm [resolvable:$true] %s430
          %433 = dma.vmem_to_hbm [thread:$0]  %s429, 128, %s431, %s398
        $region52: #{tpu_custom_call.1} parent=35 // pred_fallthru
          _
      $region36: #{tpu_custom_call.1} parent=5 // pred_fallthru
        _
      %p434 = scmp.le.s32.totalorder 2, %s24
      // Predicated region
      $region53: #{tpu_custom_call.1} parent=5 // pred_check
        %p435 = pneg %p434
      $region54: #{tpu_custom_call.1} parent=5 // pred_check_branch
        %437 = sbr.rel (%p435) target = $region56
      $region55: #{tpu_custom_call.1} parent=5 // pred_region
        %s438 = ssub.s32 %s24, 2
        // Predicated region
        $region57: #{tpu_custom_call.1} parent=55 // pred_check
          %p439 = pneg %p165
        $region58: #{tpu_custom_call.1} parent=55 // pred_check_branch
          %441 = sbr.rel (%p439) target = $region60
        $region59: #{tpu_custom_call.1} parent=55 // pred_region
          %s442 = sand.u32 %s150, 1
          %s443 = scalar_lea.sflag [#allocation4], %s442
          %s444 = sand.u32 %s150, 1
          %s445 = smul.addr %s444, 8
          %s446 = scalar_lea.vmem [#allocation7], %s445
          %448 = dma.done %s443, 128
        $region60: #{tpu_custom_call.1} parent=55 // pred_fallthru
          _
        // Predicated region
        $region61: #{tpu_custom_call.1} parent=55 // pred_check
          %p449 = pneg %p193
        $region62: #{tpu_custom_call.1} parent=55 // pred_check_branch
          %451 = sbr.rel (%p449) target = $region64
        $region63: #{tpu_custom_call.1} parent=55 // pred_region
          %s452 = sand.u32 %s178, 1
          %s453 = scalar_lea.sflag [#allocation9], %s452
          %s454 = sand.u32 %s178, 1
          %s455 = smul.addr %s454, 8
          %s456 = scalar_lea.vmem [#allocation8], %s455
          %458 = dma.done %s453, 128
        $region64: #{tpu_custom_call.1} parent=55 // pred_fallthru
          _
      $region56: #{tpu_custom_call.1} parent=5 // pred_fallthru
        _
    $region6: #{tpu_custom_call.1} parent=1 // loop_footer
      %s28 = sadd.s32 1, %s24
    $region7: #{tpu_custom_call.1} parent=1 // loop_footer_branch
      %23 = sbr.rel target = $region3
    $region8: #{tpu_custom_call.1} parent=1 // loop_exit
      _
    %459 = vsyncpa [#allocation3], 1
    %s460 = scalar_lea.sflag [#allocation3], 1
    %461 = vsyncpa %s460, 1
    %462 = vsyncpa [#allocation6], 1
    %s463 = scalar_lea.sflag [#allocation6], 1
    %464 = vsyncpa %s463, 1
    %465 = vsyncpa [#allocation4], 1
    %s466 = scalar_lea.sflag [#allocation4], 1
    %467 = vsyncpa %s466, 1
    %468 = vsyncpa [#allocation9], 1
    %s469 = scalar_lea.sflag [#allocation9], 1
    %470 = vsyncpa %s469, 1

</llo_original>
